<compile_context>
chip_gen: v7x
topology: tpu7x:2x2x1
jax: 0.10.0
libtpu: 0.0.40
codegen_flags: <defaults>
</compile_context>

<pallas_src>
import math
from functools import partial, reduce
from operator import mul

import jax
import jax.numpy as jnp
from jax.experimental import pallas as pl
from jax.experimental.pallas import tpu as pltpu


# -----------------------------------------------------------------------------
# Kernel.  Grid = (cdiv(M, tm), Hs // tHs).  Per (i, h):
#   h == 0   : delta = (X @ Wd1 + bd1) @ Wd2 + bd2   (cached bf16 in VMEM)
#              acc   = 0
#   every h  : acc  += gelu(delta @ Ws1[:, h] + bs1[h]) @ Ws2[h, :]
#   h == last: out   = X + acc + bs2        (residual in f32)
# -----------------------------------------------------------------------------
def reins_kernel(x_ref, wd1_ref, bd1_ref, wd2_ref, bd2_ref,
                 ws1_ref, bs1_ref, ws2_ref, bs2_ref, o_ref,
                 delta_ref, acc_ref, *, gelu_approx=True):
    h = pl.program_id(1)

    @pl.when(h == 0)
    def _init():
        xb = x_ref[...].astype(jnp.bfloat16)                 # cast only the matmul operand
        t = jnp.dot(xb, wd1_ref[...],
                    preferred_element_type=jnp.float32) + bd1_ref[...]
        delta = jnp.dot(t.astype(jnp.bfloat16), wd2_ref[...],
                        preferred_element_type=jnp.float32) + bd2_ref[...]
        delta_ref[...] = delta.astype(delta_ref.dtype)       # bf16 cache (matmul LHS)
        acc_ref[...] = jnp.zeros_like(acc_ref)

    # shared_mlp, one Hs chunk: Linear -> GELU -> Linear (accumulated in f32)
    hs = jnp.dot(delta_ref[...], ws1_ref[...],
                 preferred_element_type=jnp.float32) + bs1_ref[...]
    hs = jax.nn.gelu(hs, approximate=gelu_approx)            # tanh -> EUP slot
    acc_ref[...] += jnp.dot(hs.astype(jnp.bfloat16), ws2_ref[...],
                            preferred_element_type=jnp.float32)

    @pl.when(h == pl.num_programs(1) - 1)
    def _finalize():
        # feats = feats + delta_feat  (residual in f32; final bias folded in)
        o_ref[...] = (x_ref[...].astype(jnp.float32)
                      + acc_ref[...] + bs2_ref[...]).astype(o_ref.dtype)


# -----------------------------------------------------------------------------
# Tiling helpers.
# -----------------------------------------------------------------------------
def _round_up(v, m):
    return ((v + m - 1) // m) * m


def _pick_hs_chunk(Hs, target):
    """Largest multiple of 128 that divides Hs and is <= target (else Hs)."""
    if Hs <= target or Hs % 128 != 0:
        return Hs
    best = 128
    c = 256
    while c <= target:
        if Hs % c == 0:
            best = c
        c += 128
    return best


def _vmem_capacity_bytes():
    """Per-core VMEM capacity; conservative 64 MiB fallback (v7x)."""
    try:
        info = pltpu.get_tpu_info()
        cap = getattr(info, "vmem_capacity_bytes", None)
        if cap:
            return int(cap)
    except Exception:
        pass
    return 64 << 20


def _run_reins_core(x, wd1, bd1, wd2, bd2, ws1, bs1, ws2, bs2,
                    *, out_dtype, tm=None, gelu_approx=True):
    """x: (M, E) in its original dtype; weights bf16 (in, out); biases f32 (1, out)."""
    M, E = x.shape
    Hd = wd1.shape[1]
    Hs = ws1.shape[1]

    cap = _vmem_capacity_bytes()
    big_vmem = cap >= (100 << 20)            # v5e / v6e (128 MiB) vs v7x (64 MiB)

    # Row tile: generation-aware default, multiple of 16, capped by M.
    if tm is None:
        tm = 1024 if big_vmem else 512
    tm = max(16, min(int(tm), _round_up(M, 16)))
    n_m = pl.cdiv(M, tm)                     # ragged last tile handled by Pallas

    # Hs reduction chunk: keeps shared-weight chunks + GELU intermediate small.
    tHs = _pick_hs_chunk(Hs, 2048 if big_vmem else 1024)
    n_hs = Hs // tHs

    in_bytes = x.dtype.itemsize
    out_bytes = jnp.dtype(out_dtype).itemsize

    # Resident-set estimate (double-buffered pipelined inputs/outputs + scratch).
    est = (
        2 * tm * E * in_bytes                 # x tiles (x2 buffers)
        + 2 * tm * E * out_bytes              # out tiles (x2 buffers)
        + 2 * 2 * (E * Hd + Hd * E) * 2       # depend weights bf16 (x2 buffers)
        + 2 * 2 * (E * tHs + tHs * E) * 2     # shared weight chunks bf16 (x2 buffers)
        + 2 * 4 * (Hd + 2 * E + tHs)          # f32 biases (x2 buffers)
        + tm * E * (2 + 4)                    # delta (bf16) + acc (f32) scratch
        + 2 * tm * tHs * 4                    # f32 matmul / GELU intermediates
    )
    vmem_limit = max(int(est * 1.5), 32 << 20)
    vmem_limit = min(vmem_limit, cap - (8 << 20))   # never request above physical

    cost = pl.CostEstimate(
        flops=4 * M * E * (Hd + Hs),
        transcendentals=M * Hs,
        bytes_accessed=(
            M * E * (in_bytes + out_bytes)            # activations in / out
            + n_m * (E * Hs + Hs * E) * 2             # shared weights restreamed per row tile
            + (E * Hd + Hd * E) * 2                   # depend weights fetched once
            + 4 * (Hd + 2 * E + Hs)                   # biases
        ),
    )

    full = lambda i, h: (0, 0)
    rows = lambda i, h: (i, 0)

    return pl.pallas_call(
        partial(reins_kernel, gelu_approx=gelu_approx),
        out_shape=jax.ShapeDtypeStruct((M, E), out_dtype),
        grid_spec=pltpu.PrefetchScalarGridSpec(
            num_scalar_prefetch=0,
            grid=(n_m, n_hs),
            in_specs=[
                pl.BlockSpec((tm, E), rows),                    # x tile (orig dtype)
                pl.BlockSpec((E, Hd), full),                    # depend W1 (bf16)
                pl.BlockSpec((1, Hd), full),                    # depend b1 (f32)
                pl.BlockSpec((Hd, E), full),                    # depend W2 (bf16)
                pl.BlockSpec((1, E), full),                     # depend b2 (f32)
                pl.BlockSpec((E, tHs), lambda i, h: (0, h)),    # shared W1 chunk (bf16)
                pl.BlockSpec((1, tHs), lambda i, h: (0, h)),    # shared b1 chunk (f32)
                pl.BlockSpec((tHs, E), lambda i, h: (h, 0)),    # shared W2 chunk (bf16)
                pl.BlockSpec((1, E), full),                     # shared b2 (f32)
            ],
            out_specs=pl.BlockSpec((tm, E), rows),
            scratch_shapes=[
                pltpu.VMEM((tm, E), jnp.bfloat16),              # cached delta
                pltpu.VMEM((tm, E), jnp.float32),               # dsh accumulator
            ],
        ),
        compiler_params=pltpu.CompilerParams(
            dimension_semantics=("parallel", "arbitrary"),
            vmem_limit_bytes=vmem_limit),
        cost_estimate=cost,
    )(x, wd1, bd1, wd2, bd2, ws1, bs1, ws2, bs2)


# -----------------------------------------------------------------------------
# Parameter construction (deterministic, mirrors __init__ shapes & init).
# -----------------------------------------------------------------------------
def init_myreins_params(key, *, num_layers, embed_dims, patch_size,
                        query_dims=256, token_length=100, mlp_scale=8):
    hidden_dep = embed_dims // mlp_scale     # is_depend, not high_high
    hidden_sh = embed_dims * mlp_scale       # is_share, not low_low

    ks = jax.random.split(key, 10)

    def linear(k, fan_in, fan_out):
        # kaiming_uniform_(a=sqrt(5)) == U(-1/sqrt(fan_in), 1/sqrt(fan_in)); bias = 0
        bound = 1.0 / math.sqrt(fan_in)
        w = jax.random.uniform(k, (fan_in, fan_out), jnp.float32, -bound, bound)
        b = jnp.zeros((1, fan_out), jnp.float32)
        return w, b

    # learnable_tokens (created in __init__, unused by forward)
    val = math.sqrt(6.0 / float(3 * reduce(mul, (patch_size, patch_size), 1) + embed_dims))
    learnable_tokens = jax.random.uniform(
        ks[0], (num_layers, token_length, embed_dims), jnp.float32, -val, val)

    # depend_mlp: per-layer (Linear(E, Hd), Linear(Hd, E)), no activation between
    dep_w1 = jnp.stack([linear(k, embed_dims, hidden_dep)[0]
                        for k in jax.random.split(ks[1], num_layers)])
    dep_b1 = jnp.zeros((num_layers, 1, hidden_dep), jnp.float32)
    dep_w2 = jnp.stack([linear(k, hidden_dep, embed_dims)[0]
                        for k in jax.random.split(ks[2], num_layers)])
    dep_b2 = jnp.zeros((num_layers, 1, embed_dims), jnp.float32)

    # shared_mlp: Linear(E, Hs) -> GELU -> Linear(Hs, E)
    sh_w1, sh_b1 = linear(ks[3], embed_dims, hidden_sh)
    sh_w2, sh_b2 = linear(ks[4], hidden_sh, embed_dims)

    # transform / merge (created in __init__, unused by forward)
    tr_w, tr_b = linear(ks[5], embed_dims, query_dims)
    mg_w, mg_b = linear(ks[6], query_dims * 3, query_dims)

    return dict(
        learnable_tokens=learnable_tokens,
        dep_w1=dep_w1, dep_b1=dep_b1, dep_w2=dep_w2, dep_b2=dep_b2,
        sh_w1=sh_w1, sh_b1=sh_b1, sh_w2=sh_w2, sh_b2=sh_b2,
        transform_w=tr_w, transform_b=tr_b, merge_w=mg_w, merge_b=mg_b,
    )


def prepare_kernel_params(params):
    """One-time bf16 cast of the matmul weights (hoisted out of the per-call path)."""
    bf = lambda a: a.astype(jnp.bfloat16)
    f32 = lambda a: a.astype(jnp.float32)
    return dict(
        dep_w1=bf(params["dep_w1"]), dep_b1=f32(params["dep_b1"]),
        dep_w2=bf(params["dep_w2"]), dep_b2=f32(params["dep_b2"]),
        sh_w1=bf(params["sh_w1"]), sh_b1=f32(params["sh_b1"]),
        sh_w2=bf(params["sh_w2"]), sh_b2=f32(params["sh_b2"]),
    )


# -----------------------------------------------------------------------------
# Forward wrapper (glue: permute / cls split / layer select / reshape).
# -----------------------------------------------------------------------------
def myreins_forward(kparams, feats, layer, batch_first=False, has_cls_token=True,
                    *, tm=None, gelu_approx=True):
    in_dtype = feats.dtype
    if batch_first:
        feats = jnp.transpose(feats, (1, 0, 2))          # -> (seq, batch, E)
    if has_cls_token:
        cls_token, body = feats[:1], feats[1:]
    else:
        cls_token, body = None, feats

    S, B, E = body.shape
    x = body.reshape(S * B, E)                           # keep original dtype (f32 residual)

    out = _run_reins_core(
        x,
        kparams["dep_w1"][layer], kparams["dep_b1"][layer],
        kparams["dep_w2"][layer], kparams["dep_b2"][layer],
        kparams["sh_w1"], kparams["sh_b1"],
        kparams["sh_w2"], kparams["sh_b2"],
        out_dtype=in_dtype, tm=tm, gelu_approx=gelu_approx,
    )
    out = out.reshape(S, B, E)

    if has_cls_token:
        out = jnp.concatenate([cls_token.astype(out.dtype), out], axis=0)
    if batch_first:
        out = jnp.transpose(out, (1, 0, 2))
    return out


# Pure-JAX f32 reference (exact erf GELU, like torch.nn.GELU()) for sanity check.
def myreins_reference(params, feats, layer, batch_first=False, has_cls_token=True):
    if batch_first:
        feats = jnp.transpose(feats, (1, 0, 2))
    if has_cls_token:
        cls_token, body = feats[:1], feats[1:]
    else:
        cls_token, body = None, feats
    h = body @ params["dep_w1"][layer] + params["dep_b1"][layer]
    delta = h @ params["dep_w2"][layer] + params["dep_b2"][layer]
    hs = jax.nn.gelu(delta @ params["sh_w1"] + params["sh_b1"], approximate=False)
    dsh = hs @ params["sh_w2"] + params["sh_b2"]
    out = body + dsh
    if has_cls_token:
        out = jnp.concatenate([cls_token, out], axis=0)
    if batch_first:
        out = jnp.transpose(out, (1, 0, 2))
    return out


if __name__ == "__main__":
    # Small shapes: num_layers=2, embed_dims=32, mlp_scale=4, patch_size=16.
    # feats: (seq = 1 cls + 16 patch tokens, batch=2, embed=32), batch_first=False.
    num_layers, embed_dims, patch_size, mlp_scale = 2, 32, 16, 4
    seq_with_cls, batch = 17, 2
    layer = 1

    key = jax.random.PRNGKey(0)
    kp, kx = jax.random.split(key)
    params = init_myreins_params(
        kp, num_layers=num_layers, embed_dims=embed_dims,
        patch_size=patch_size, query_dims=64, token_length=16,
        mlp_scale=mlp_scale)
    kparams = prepare_kernel_params(params)              # one-time bf16 weights

    feats = jax.random.normal(kx, (seq_with_cls, batch, embed_dims), jnp.float32)

    out = myreins_forward(kparams, feats, layer)
    out = jax.block_until_ready(out)

    ref = myreins_reference(params, feats, layer)
    assert out.shape == feats.shape
    # bf16 matmul path + tanh-GELU vs pure-f32 exact-GELU reference -> loose tolerance.
    assert jnp.max(jnp.abs(out - ref)) < 5e-2, "mismatch vs reference"
    # cls token must pass through untouched.
    assert jnp.array_equal(out[:1], feats[:1].astype(out.dtype))

    print("KERNEL_OK")
</pallas_src>

<mosaic_0001>
module attributes {stable_mosaic.version = 11 : i64} {
  func.func @reins_kernel(%arg0: i32, %arg1: i32, %arg2: memref<32x32xf32, #tpu.memory_space<vmem>>, %arg3: memref<32x8xbf16, #tpu.memory_space<vmem>>, %arg4: memref<1x8xf32, #tpu.memory_space<vmem>>, %arg5: memref<8x32xbf16, #tpu.memory_space<vmem>>, %arg6: memref<1x32xf32, #tpu.memory_space<vmem>>, %arg7: memref<32x128xbf16, #tpu.memory_space<vmem>>, %arg8: memref<1x128xf32, #tpu.memory_space<vmem>>, %arg9: memref<128x32xbf16, #tpu.memory_space<vmem>>, %arg10: memref<1x32xf32, #tpu.memory_space<vmem>>, %arg11: memref<32x32xf32, #tpu.memory_space<vmem>>, %arg12: memref<32x32xbf16, #tpu.memory_space<vmem>>, %arg13: memref<32x32xf32, #tpu.memory_space<vmem>>) attributes {dimension_semantics = [#tpu.dimension_semantics<parallel>, #tpu.dimension_semantics<arbitrary>], iteration_bounds = array<i64: 1, 1>, scalar_prefetch = 0 : i64, scratch_operands = 2 : i64, tpu.core_type = #tpu.core_type<tc>, window_params = [{transform_indices = @transform_0, window_bounds = array<i64: 32, 32>}, {pipeline_mode = #tpu.pipeline_mode<synchronous>, transform_indices = @transform_1, window_bounds = array<i64: 32, 8>}, {pipeline_mode = #tpu.pipeline_mode<synchronous>, transform_indices = @transform_2, window_bounds = array<i64: 1, 8>}, {pipeline_mode = #tpu.pipeline_mode<synchronous>, transform_indices = @transform_3, window_bounds = array<i64: 8, 32>}, {pipeline_mode = #tpu.pipeline_mode<synchronous>, transform_indices = @transform_4, window_bounds = array<i64: 1, 32>}, {transform_indices = @transform_5, window_bounds = array<i64: 32, 128>}, {transform_indices = @transform_6, window_bounds = array<i64: 1, 128>}, {transform_indices = @transform_7, window_bounds = array<i64: 128, 32>}, {pipeline_mode = #tpu.pipeline_mode<synchronous>, transform_indices = @transform_8, window_bounds = array<i64: 1, 32>}, {transform_indices = @transform_9, window_bounds = array<i64: 32, 32>}]} {
    %c0_i32 = arith.constant 0 : i32
    %0 = arith.cmpi eq, %arg1, %c0_i32 : i32
    %1 = arith.extui %0 : i1 to i32
    %c0_i32_0 = arith.constant 0 : i32
    %2 = arith.cmpi ne, %1, %c0_i32_0 : i32
    scf.if %2 {
      %c0_19 = arith.constant 0 : index
      %c0_20 = arith.constant 0 : index
      %31 = vector.load %arg2[%c0_19, %c0_20] : memref<32x32xf32, #tpu.memory_space<vmem>>, vector<32x32xf32>
      %32 = arith.truncf %31 : vector<32x32xf32> to vector<32x32xbf16>
      %c0_21 = arith.constant 0 : index
      %c0_22 = arith.constant 0 : index
      %33 = vector.load %arg3[%c0_21, %c0_22] : memref<32x8xbf16, #tpu.memory_space<vmem>>, vector<32x8xbf16>
      %cst_23 = arith.constant dense<0.000000e+00> : vector<32x8xf32>
      %34 = tpu.matmul %32, %33, %cst_23 {dimension_numbers = #tpu.dot_dimension_numbers<[1], [0], [0], [1], [0, 0, 1, 1], [], []>} : vector<32x32xbf16>, vector<32x8xbf16>, vector<32x8xf32> -> vector<32x8xf32>
      %c0_24 = arith.constant 0 : index
      %c0_25 = arith.constant 0 : index
      %35 = vector.load %arg4[%c0_24, %c0_25] : memref<1x8xf32, #tpu.memory_space<vmem>>, vector<1x8xf32>
      %36 = vector.broadcast %35 : vector<1x8xf32> to vector<32x8xf32>
      %37 = arith.addf %34, %36 : vector<32x8xf32>
      %38 = arith.truncf %37 : vector<32x8xf32> to vector<32x8xbf16>
      %c0_26 = arith.constant 0 : index
      %c0_27 = arith.constant 0 : index
      %39 = vector.load %arg5[%c0_26, %c0_27] : memref<8x32xbf16, #tpu.memory_space<vmem>>, vector<8x32xbf16>
      %cst_28 = arith.constant dense<0.000000e+00> : vector<32x32xf32>
      %40 = tpu.matmul %38, %39, %cst_28 {dimension_numbers = #tpu.dot_dimension_numbers<[1], [0], [0], [1], [0, 0, 1, 1], [], []>} : vector<32x8xbf16>, vector<8x32xbf16>, vector<32x32xf32> -> vector<32x32xf32>
      %c0_29 = arith.constant 0 : index
      %c0_30 = arith.constant 0 : index
      %41 = vector.load %arg6[%c0_29, %c0_30] : memref<1x32xf32, #tpu.memory_space<vmem>>, vector<1x32xf32>
      %42 = vector.broadcast %41 : vector<1x32xf32> to vector<32x32xf32>
      %43 = arith.addf %40, %42 : vector<32x32xf32>
      %44 = arith.truncf %43 : vector<32x32xf32> to vector<32x32xbf16>
      %c0_31 = arith.constant 0 : index
      %c0_32 = arith.constant 0 : index
      %45 = vector.load %arg12[%c0_31, %c0_32] : memref<32x32xbf16, #tpu.memory_space<vmem>>, vector<32x32xbf16>
      tpu.vector_store %arg12[%c0_31, %c0_32], %44 {strides = array<i32>} : memref<32x32xbf16, #tpu.memory_space<vmem>>, vector<32x32xbf16>,
      %cst_33 = arith.constant 0.000000e+00 : f32
      %46 = vector.broadcast %cst_33 : f32 to vector<32x32xf32>
      %c0_34 = arith.constant 0 : index
      %c0_35 = arith.constant 0 : index
      %47 = vector.load %arg13[%c0_34, %c0_35] : memref<32x32xf32, #tpu.memory_space<vmem>>, vector<32x32xf32>
      tpu.vector_store %arg13[%c0_34, %c0_35], %46 {strides = array<i32>} : memref<32x32xf32, #tpu.memory_space<vmem>>, vector<32x32xf32>,
    } else {
    }
    %c0 = arith.constant 0 : index
    %c0_1 = arith.constant 0 : index
    %3 = vector.load %arg12[%c0, %c0_1] : memref<32x32xbf16, #tpu.memory_space<vmem>>, vector<32x32xbf16>
    %c0_2 = arith.constant 0 : index
    %c0_3 = arith.constant 0 : index
    %4 = vector.load %arg7[%c0_2, %c0_3] : memref<32x128xbf16, #tpu.memory_space<vmem>>, vector<32x128xbf16>
    %cst = arith.constant dense<0.000000e+00> : vector<32x128xf32>
    %5 = tpu.matmul %3, %4, %cst {dimension_numbers = #tpu.dot_dimension_numbers<[1], [0], [0], [1], [0, 0, 1, 1], [], []>} : vector<32x32xbf16>, vector<32x128xbf16>, vector<32x128xf32> -> vector<32x128xf32>
    %c0_4 = arith.constant 0 : index
    %c0_5 = arith.constant 0 : index
    %6 = vector.load %arg8[%c0_4, %c0_5] : memref<1x128xf32, #tpu.memory_space<vmem>>, vector<1x128xf32>
    %7 = vector.broadcast %6 : vector<1x128xf32> to vector<32x128xf32>
    %8 = arith.addf %5, %7 : vector<32x128xf32>
    %9 = arith.mulf %8, %8 : vector<32x128xf32>
    %10 = arith.mulf %8, %9 : vector<32x128xf32>
    %cst_6 = arith.constant 4.471500e-02 : f32
    %11 = vector.broadcast %cst_6 : f32 to vector<32x128xf32>
    %12 = arith.mulf %11, %10 : vector<32x128xf32>
    %13 = arith.addf %8, %12 : vector<32x128xf32>
    %cst_7 = arith.constant 0.797884583 : f32
    %14 = vector.broadcast %cst_7 : f32 to vector<32x128xf32>
    %15 = arith.mulf %14, %13 : vector<32x128xf32>
    %16 = math.tanh %15 : vector<32x128xf32>
    %cst_8 = arith.constant 1.000000e+00 : f32
    %17 = vector.broadcast %cst_8 : f32 to vector<32x128xf32>
    %18 = arith.addf %17, %16 : vector<32x128xf32>
    %cst_9 = arith.constant 5.000000e-01 : f32
    %19 = vector.broadcast %cst_9 : f32 to vector<32x128xf32>
    %20 = arith.mulf %19, %18 : vector<32x128xf32>
    %21 = arith.mulf %8, %20 : vector<32x128xf32>
    %c0_10 = arith.constant 0 : index
    %c0_11 = arith.constant 0 : index
    %22 = vector.load %arg13[%c0_10, %c0_11] : memref<32x32xf32, #tpu.memory_space<vmem>>, vector<32x32xf32>
    %23 = arith.truncf %21 : vector<32x128xf32> to vector<32x128xbf16>
    %c0_12 = arith.constant 0 : index
    %c0_13 = arith.constant 0 : index
    %24 = vector.load %arg9[%c0_12, %c0_13] : memref<128x32xbf16, #tpu.memory_space<vmem>>, vector<128x32xbf16>
    %cst_14 = arith.constant dense<0.000000e+00> : vector<32x32xf32>
    %25 = tpu.matmul %23, %24, %cst_14 {dimension_numbers = #tpu.dot_dimension_numbers<[1], [0], [0], [1], [0, 0, 1, 1], [], []>} : vector<32x128xbf16>, vector<128x32xbf16>, vector<32x32xf32> -> vector<32x32xf32>
    %26 = arith.addf %22, %25 : vector<32x32xf32>
    %c0_15 = arith.constant 0 : index
    %c0_16 = arith.constant 0 : index
    %27 = vector.load %arg13[%c0_15, %c0_16] : memref<32x32xf32, #tpu.memory_space<vmem>>, vector<32x32xf32>
    tpu.vector_store %arg13[%c0_15, %c0_16], %26 {strides = array<i32>} : memref<32x32xf32, #tpu.memory_space<vmem>>, vector<32x32xf32>,
    %c0_i32_17 = arith.constant 0 : i32
    %28 = arith.cmpi eq, %arg1, %c0_i32_17 : i32
    %29 = arith.extui %28 : i1 to i32
    %c0_i32_18 = arith.constant 0 : i32
    %30 = arith.cmpi ne, %29, %c0_i32_18 : i32
    scf.if %30 {
      %c0_19 = arith.constant 0 : index
      %c0_20 = arith.constant 0 : index
      %31 = vector.load %arg2[%c0_19, %c0_20] : memref<32x32xf32, #tpu.memory_space<vmem>>, vector<32x32xf32>
      %c0_21 = arith.constant 0 : index
      %c0_22 = arith.constant 0 : index
      %32 = vector.load %arg13[%c0_21, %c0_22] : memref<32x32xf32, #tpu.memory_space<vmem>>, vector<32x32xf32>
      %33 = arith.addf %31, %32 : vector<32x32xf32>
      %c0_23 = arith.constant 0 : index
      %c0_24 = arith.constant 0 : index
      %34 = vector.load %arg10[%c0_23, %c0_24] : memref<1x32xf32, #tpu.memory_space<vmem>>, vector<1x32xf32>
      %35 = vector.broadcast %34 : vector<1x32xf32> to vector<32x32xf32>
      %36 = arith.addf %33, %35 : vector<32x32xf32>
      %c0_25 = arith.constant 0 : index
      %c0_26 = arith.constant 0 : index
      %37 = vector.load %arg11[%c0_25, %c0_26] : memref<32x32xf32, #tpu.memory_space<vmem>>, vector<32x32xf32>
      tpu.vector_store %arg11[%c0_25, %c0_26], %36 {strides = array<i32>} : memref<32x32xf32, #tpu.memory_space<vmem>>, vector<32x32xf32>,
    } else {
    }
    return
  }
  func.func @transform_0(%arg0: i32, %arg1: i32) -> (i32, i32) {
    %c0_i32 = arith.constant 0 : i32
    %c0_i32_0 = arith.constant 0 : i32
    return %arg0, %c0_i32 : i32, i32
  }
  func.func @transform_1(%arg0: i32, %arg1: i32) -> (i32, i32) {
    %c0_i32 = arith.constant 0 : i32
    %c0_i32_0 = arith.constant 0 : i32
    %c0_i32_1 = arith.constant 0 : i32
    return %c0_i32, %c0_i32_0 : i32, i32
  }
  func.func @transform_2(%arg0: i32, %arg1: i32) -> (i32, i32) {
    %c0_i32 = arith.constant 0 : i32
    %c0_i32_0 = arith.constant 0 : i32
    %c0_i32_1 = arith.constant 0 : i32
    return %c0_i32, %c0_i32_0 : i32, i32
  }
  func.func @transform_3(%arg0: i32, %arg1: i32) -> (i32, i32) {
    %c0_i32 = arith.constant 0 : i32
    %c0_i32_0 = arith.constant 0 : i32
    %c0_i32_1 = arith.constant 0 : i32
    return %c0_i32, %c0_i32_0 : i32, i32
  }
  func.func @transform_4(%arg0: i32, %arg1: i32) -> (i32, i32) {
    %c0_i32 = arith.constant 0 : i32
    %c0_i32_0 = arith.constant 0 : i32
    %c0_i32_1 = arith.constant 0 : i32
    return %c0_i32, %c0_i32_0 : i32, i32
  }
  func.func @transform_5(%arg0: i32, %arg1: i32) -> (i32, i32) {
    %c0_i32 = arith.constant 0 : i32
    %c0_i32_0 = arith.constant 0 : i32
    return %c0_i32, %arg1 : i32, i32
  }
  func.func @transform_6(%arg0: i32, %arg1: i32) -> (i32, i32) {
    %c0_i32 = arith.constant 0 : i32
    %c0_i32_0 = arith.constant 0 : i32
    return %c0_i32, %arg1 : i32, i32
  }
  func.func @transform_7(%arg0: i32, %arg1: i32) -> (i32, i32) {
    %c0_i32 = arith.constant 0 : i32
    %c0_i32_0 = arith.constant 0 : i32
    return %arg1, %c0_i32 : i32, i32
  }
  func.func @transform_8(%arg0: i32, %arg1: i32) -> (i32, i32) {
    %c0_i32 = arith.constant 0 : i32
    %c0_i32_0 = arith.constant 0 : i32
    %c0_i32_1 = arith.constant 0 : i32
    return %c0_i32, %c0_i32_0 : i32, i32
  }
  func.func @transform_9(%arg0: i32, %arg1: i32) -> (i32, i32) {
    %c0_i32 = arith.constant 0 : i32
    %c0_i32_0 = arith.constant 0 : i32
    return %arg0, %c0_i32 : i32, i32
  }
}

</mosaic_0001>

<llo_original>
// kernel: tpu_custom_call.1
$region0: #{tpu_custom_call.1}
  #allocation0 [shape = 'u32[]', space=smem, size = 0x4, offset = 0x4, fixed_abs, tag = 'smem constant byte address 0x4 - core index']
  #allocation1 [shape = 'u32[144,128]{1,0:T(1,128)}', space=vmem, size = 0x12000, scoped, tag = 'internal scratch']
  #allocation2 [shape = 'bf16[32,32]{1,0:T(16,128)(2,1)}', space=vmem, size = 0x2000, scoped, tag = 'scratch operand']
  #allocation3 [shape = 'f32[32,32]{1,0:T(8,128)}', space=vmem, size = 0x4000, scoped, tag = 'scratch operand']
  %s0 = inlined_call_operand.vmem [shape: f32[32,32], index: 0, kind: input, shape index: {}]
  %s1 = inlined_call_operand.vmem [shape: bf16[32,8], index: 1, kind: input, shape index: {}]
  %s2 = inlined_call_operand.vmem [shape: f32[1,8], index: 2, kind: input, shape index: {}]
  %s3 = inlined_call_operand.vmem [shape: bf16[8,32], index: 3, kind: input, shape index: {}]
  %s4 = inlined_call_operand.vmem [shape: f32[1,32], index: 4, kind: input, shape index: {}]
  %s5 = inlined_call_operand.vmem [shape: bf16[32,128], index: 5, kind: input, shape index: {}]
  %s6 = inlined_call_operand.vmem [shape: f32[1,128], index: 6, kind: input, shape index: {}]
  %s7 = inlined_call_operand.vmem [shape: bf16[128,32], index: 7, kind: input, shape index: {}]
  %s8 = inlined_call_operand.vmem [shape: f32[1,32], index: 8, kind: input, shape index: {}]
  %s9 = inlined_call_operand.hbm [shape: f32[32,32], index: 9, kind: output, shape index: {}]
  %s10 = sld [smem:[#allocation0]]
  $region54: #{tpu_custom_call.1} parent=0
    _
  %s12 = ssub.s32 1, %s10
  %s13 = scalar_select 0, %s12, %s10
  $region1: #{tpu_custom_call.1} parent=0
    #allocation4 [shape = 'u8[16384]{0}', space=vmem, size = 0x4000, scoped, tag = 'output window, operand 0, single buffered']
    #allocation5 [shape = 's32[1]{0}', space=sflag, size = 0x4, scoped, tag = 'scoped memory for tpu_custom_call.1']
    %14 = vsyncpa [#allocation5], 0
    // Predicated region
    $region2: #{tpu_custom_call.1} parent=1 // pred_check
      _
    $region3: #{tpu_custom_call.1} parent=1 // pred_check_branch
      %16 = sbr.rel (0) target = $region5
    $region4: #{tpu_custom_call.1} parent=1 // pred_region
      _
    $region5: #{tpu_custom_call.1} parent=1 // pred_fallthru
      _
    // Predicated region
    $region6: #{tpu_custom_call.1} parent=1 // pred_check
      _
    $region7: #{tpu_custom_call.1} parent=1 // pred_check_branch
      %18 = sbr.rel (0) target = $region9
    $region8: #{tpu_custom_call.1} parent=1 // pred_region
      _
    $region9: #{tpu_custom_call.1} parent=1 // pred_fallthru
      _
    // Predicated region
    $region10: #{tpu_custom_call.1} parent=1 // pred_check
      _
    $region11: #{tpu_custom_call.1} parent=1 // pred_check_branch
      %20 = sbr.rel (0) target = $region13
    $region12: #{tpu_custom_call.1} parent=1 // pred_region
      _
    $region13: #{tpu_custom_call.1} parent=1 // pred_fallthru
      _
    // Predicated region
    $region14: #{tpu_custom_call.1} parent=1 // pred_check
      _
    $region15: #{tpu_custom_call.1} parent=1 // pred_check_branch
      %22 = sbr.rel (0) target = $region17
    $region16: #{tpu_custom_call.1} parent=1 // pred_region
      _
    $region17: #{tpu_custom_call.1} parent=1 // pred_fallthru
      _
    // Predicated region
    $region18: #{tpu_custom_call.1} parent=1 // pred_check
      _
    $region19: #{tpu_custom_call.1} parent=1 // pred_check_branch
      %24 = sbr.rel (0) target = $region21
    $region20: #{tpu_custom_call.1} parent=1 // pred_region
      _
    $region21: #{tpu_custom_call.1} parent=1 // pred_fallthru
      _
    // Predicated region
    $region22: #{tpu_custom_call.1} parent=1 // pred_check
      _
    $region23: #{tpu_custom_call.1} parent=1 // pred_check_branch
      %26 = sbr.rel (0) target = $region25
    $region24: #{tpu_custom_call.1} parent=1 // pred_region
      _
    $region25: #{tpu_custom_call.1} parent=1 // pred_fallthru
      _
    // Predicated region
    $region26: #{tpu_custom_call.1} parent=1 // pred_check
      _
    $region27: #{tpu_custom_call.1} parent=1 // pred_check_branch
      %28 = sbr.rel (0) target = $region29
    $region28: #{tpu_custom_call.1} parent=1 // pred_region
      _
    $region29: #{tpu_custom_call.1} parent=1 // pred_fallthru
      _
    // Predicated region
    $region30: #{tpu_custom_call.1} parent=1 // pred_check
      _
    $region31: #{tpu_custom_call.1} parent=1 // pred_check_branch
      %30 = sbr.rel (0) target = $region33
    $region32: #{tpu_custom_call.1} parent=1 // pred_region
      _
    $region33: #{tpu_custom_call.1} parent=1 // pred_fallthru
      _
    // Predicated region
    $region34: #{tpu_custom_call.1} parent=1 // pred_check
      _
    $region35: #{tpu_custom_call.1} parent=1 // pred_check_branch
      %32 = sbr.rel (0) target = $region37
    $region36: #{tpu_custom_call.1} parent=1 // pred_region
      _
    $region37: #{tpu_custom_call.1} parent=1 // pred_fallthru
      _
    %p34 = scmp.eq.s32.totalorder 0, 0
    // Predicated region
    $region38: #{tpu_custom_call.1} parent=1 // pred_check
      %p35 = pneg %p34
    $region39: #{tpu_custom_call.1} parent=1 // pred_check_branch
      %37 = sbr.rel (%p35) target = $region41
    $region40: #{tpu_custom_call.1} parent=1 // pred_region
      %v38 = vld [vmem:[%s0] sm:$0xff]
      %v39 = vld [vmem:[%s0 + $0x8] sm:$0xff]
      %v40 = vld [vmem:[%s0 + $0x10] sm:$0xff]
      %v41 = vld [vmem:[%s0 + $0x18] sm:$0xff]
      %v42 = vpack.c.bf16 %v39, %v38
      %v43 = vpack.c.bf16 %v41, %v40
      %v44 = vld [vmem:[%s1] sm:$0xf]
      %v45 = vld [vmem:[%s1 + $0x4] sm:$0xf]
      %v46 = vld [vmem:[%s1 + $0x8] sm:$0xf]
      %v47 = vld [vmem:[%s1 + $0xc] sm:$0xf]
      %v48 = vld [vmem:[%s2] sm:$0x1]
      %v50 = vlaneseq
      %v51 = vshrl.u32 %v50, 7
      %v52 = vsub.s32 0, %v51
      %v53 = vrot.slane %v48, %v52
      %v59 = vunpack.c.l.b16 %v44
      %v60 = vunpack.c.l.b16 %v45
      %v61 = vunpack.c.l.b16 %v46
      %v62 = vunpack.c.l.b16 %v47
      %v63 = vpack.c.b16 %v60, %v59
      %v64 = vpack.c.b16 %v62, %v61
      %vm67 = vcmask 261120
      %v69 = vsel %vm67, %v42, 0
      %v72 = vsel %vm67, %v43, 0
      %74 = vmatprep.subr.bf16.mxu0 0
      %75 = vmatpush1.bf16.msra.mxu0 %v63
      %76 = vmatprep.subr.bf16.mxu0 0
      %77 = vmatpush1.bf16.msra.mxu0 %v64
      %78 = vmatprep.subr.bf16.mxu0 0
      %79 = vmatpush1.bf16.msra.mxu0 0
      %80 = vmatprep.subr.bf16.mxu0 0
      %81 = vmatpush1.bf16.msra.mxu0 0
      %82 = vmatprep.subr.bf16.mxu0 0
      %83 = vmatpush1.bf16.msra.mxu0 0
      %84 = vmatprep.subr.bf16.mxu0 0
      %85 = vmatpush1.bf16.msra.mxu0 0
      %86 = vmatprep.subr.bf16.mxu0 0
      %87 = vmatpush1.bf16.msra.mxu0 0
      %88 = vmatprep.subr.bf16.mxu0 0
      %89 = vmatpush1.bf16.msra.mxu0 0
      %90 = vmatprep.subr.bf16.mxu0 0
      %91 = vmatpush1.bf16.msra.mxu0 0
      %92 = vmatprep.subr.bf16.mxu0 0
      %93 = vmatpush1.bf16.msra.mxu0 0
      %94 = vmatprep.subr.bf16.mxu0 0
      %95 = vmatpush1.bf16.msra.mxu0 0
      %96 = vmatprep.subr.bf16.mxu0 0
      %97 = vmatpush1.bf16.msra.mxu0 0
      %98 = vmatprep.subr.bf16.mxu0 0
      %99 = vmatpush1.bf16.msra.mxu0 0
      %100 = vmatprep.subr.bf16.mxu0 0
      %101 = vmatpush1.bf16.msra.mxu0 0
      %102 = vmatprep.subr.bf16.mxu0 0
      %103 = vmatpush1.bf16.msra.mxu0 0
      %104 = vmatprep.subr.bf16.mxu0 0
      %105 = vmatpush1.bf16.msra.mxu0 0
      %106 = vmatprep.mubr.bf16.mxu0 0
      %107 = vmatmul.mubr.bf16.gmra.mrb[0].mxu0 %v69
      %v108 = vpop.f32.mrb[0].mxu0
      %v109 = vadd.f32 %v53, %v108
      %v110 = vpop.f32.mrb[0].mxu0
      %v111 = vpop.f32.mrb[0].mxu0
      %v112 = vadd.f32 %v53, %v111
      %v113 = vpop.f32.mrb[0].mxu0
      %114 = vmatprep.mubr.bf16.mxu0 0
      %115 = vmatmul.mubr.bf16.gmra.mrb[0].mxu0 %v72
      %v116 = vpop.f32.mrb[0].mxu0
      %v117 = vadd.f32 %v53, %v116
      %v118 = vpop.f32.mrb[0].mxu0
      %v119 = vpop.f32.mrb[0].mxu0
      %v120 = vadd.f32 %v53, %v119
      %v121 = vpop.f32.mrb[0].mxu0
      %122 = vdwg.mxu0
      %v123 = vpack.c.bf16 %v112, %v109
      %v124 = vpack.c.bf16 %v120, %v117
      %v125 = vld [vmem:[%s3] sm:$0xf]
      %v126 = vld [vmem:[%s4] sm:$0x1]
      %v128 = vlaneseq
      %v129 = vshrl.u32 %v128, 7
      %v130 = vsub.s32 0, %v129
      %v131 = vrot.slane %v126, %v130
      %vm133 = vcmask 64512
      %v135 = vsel %vm133, %v123, 0
      %v138 = vsel %vm133, %v124, 0
      %vm140 = vcmask 1043456
      %v142 = vsel %vm140, %v125, 0
      %144 = vmatprep.subr.bf16.mxu0 0
      %145 = vmatpush1.bf16.msra.mxu0 %v142
      %146 = vmatprep.subr.bf16.mxu0 0
      %147 = vmatpush1.bf16.msra.mxu0 0
      %148 = vmatprep.subr.bf16.mxu0 0
      %149 = vmatpush1.bf16.msra.mxu0 0
      %150 = vmatprep.subr.bf16.mxu0 0
      %151 = vmatpush1.bf16.msra.mxu0 0
      %152 = vmatprep.subr.bf16.mxu0 0
      %153 = vmatpush1.bf16.msra.mxu0 0
      %154 = vmatprep.subr.bf16.mxu0 0
      %155 = vmatpush1.bf16.msra.mxu0 0
      %156 = vmatprep.subr.bf16.mxu0 0
      %157 = vmatpush1.bf16.msra.mxu0 0
      %158 = vmatprep.subr.bf16.mxu0 0
      %159 = vmatpush1.bf16.msra.mxu0 0
      %160 = vmatprep.subr.bf16.mxu0 0
      %161 = vmatpush1.bf16.msra.mxu0 0
      %162 = vmatprep.subr.bf16.mxu0 0
      %163 = vmatpush1.bf16.msra.mxu0 0
      %164 = vmatprep.subr.bf16.mxu0 0
      %165 = vmatpush1.bf16.msra.mxu0 0
      %166 = vmatprep.subr.bf16.mxu0 0
      %167 = vmatpush1.bf16.msra.mxu0 0
      %168 = vmatprep.subr.bf16.mxu0 0
      %169 = vmatpush1.bf16.msra.mxu0 0
      %170 = vmatprep.subr.bf16.mxu0 0
      %171 = vmatpush1.bf16.msra.mxu0 0
      %172 = vmatprep.subr.bf16.mxu0 0
      %173 = vmatpush1.bf16.msra.mxu0 0
      %174 = vmatprep.subr.bf16.mxu0 0
      %175 = vmatpush1.bf16.msra.mxu0 0
      %176 = vmatprep.mubr.bf16.mxu0 0
      %177 = vmatmul.mubr.bf16.gmra.mrb[0].mxu0 %v135
      %v178 = vpop.f32.mrb[0].mxu0
      %v179 = vadd.f32 %v131, %v178
      %v180 = vpop.f32.mrb[0].mxu0
      %v181 = vpop.f32.mrb[0].mxu0
      %v182 = vadd.f32 %v131, %v181
      %v183 = vpop.f32.mrb[0].mxu0
      %184 = vmatprep.mubr.bf16.mxu0 0
      %185 = vmatmul.mubr.bf16.gmra.mrb[0].mxu0 %v138
      %v186 = vpop.f32.mrb[0].mxu0
      %v187 = vadd.f32 %v131, %v186
      %v188 = vpop.f32.mrb[0].mxu0
      %v189 = vpop.f32.mrb[0].mxu0
      %v190 = vadd.f32 %v131, %v189
      %v191 = vpop.f32.mrb[0].mxu0
      %192 = vdwg.mxu0
      %v193 = vpack.c.bf16 %v182, %v179
      %v194 = vpack.c.bf16 %v190, %v187
      %195 = vst.msk [vmem:[#allocation2] sm:$0xff] %vm67, %v193
      %196 = vst.msk [vmem:[#allocation2 + $0x8] sm:$0xff] %vm67, %v194
      %197 = vst.msk [vmem:[#allocation3] sm:$0xff] %vm67, 0.0
      %198 = vst.msk [vmem:[#allocation3 + $0x8] sm:$0xff] %vm67, 0.0
      %199 = vst.msk [vmem:[#allocation3 + $0x10] sm:$0xff] %vm67, 0.0
      %200 = vst.msk [vmem:[#allocation3 + $0x18] sm:$0xff] %vm67, 0.0
    $region41: #{tpu_custom_call.1} parent=1 // pred_fallthru
      _
    %v201 = vld [vmem:[#allocation2] sm:$0xff]
    %v202 = vld [vmem:[#allocation2 + $0x8] sm:$0xff]
    %v203 = vld [vmem:[%s5] sm:$0xf]
    %v204 = vld [vmem:[%s5 + $0x4] sm:$0xf]
    %v205 = vld [vmem:[%s5 + $0x8] sm:$0xf]
    %v206 = vld [vmem:[%s5 + $0xc] sm:$0xf]
    %v207 = vld [vmem:[%s6] sm:$0x1]
    %v209 = vlaneseq
    %v210 = vshrl.u32 %v209, 7
    %v211 = vsub.s32 0, %v210
    %v212 = vrot.slane %v207, %v211
    %v218 = vunpack.c.l.b16 %v203
    %v219 = vunpack.c.l.b16 %v204
    %v220 = vunpack.c.l.b16 %v205
    %v221 = vunpack.c.l.b16 %v206
    %v222 = vpack.c.b16 %v219, %v218
    %v223 = vpack.c.b16 %v221, %v220
    %vm226 = vcmask 261120
    %v228 = vsel %vm226, %v201, 0
    %v231 = vsel %vm226, %v202, 0
    %233 = vmatprep.subr.bf16.mxu0 0
    %234 = vmatpush1.bf16.msra.mxu0 %v222
    %235 = vmatprep.subr.bf16.mxu0 0
    %236 = vmatpush1.bf16.msra.mxu0 %v223
    %237 = vmatprep.subr.bf16.mxu0 0
    %238 = vmatpush1.bf16.msra.mxu0 0
    %239 = vmatprep.subr.bf16.mxu0 0
    %240 = vmatpush1.bf16.msra.mxu0 0
    %241 = vmatprep.subr.bf16.mxu0 0
    %242 = vmatpush1.bf16.msra.mxu0 0
    %243 = vmatprep.subr.bf16.mxu0 0
    %244 = vmatpush1.bf16.msra.mxu0 0
    %245 = vmatprep.subr.bf16.mxu0 0
    %246 = vmatpush1.bf16.msra.mxu0 0
    %247 = vmatprep.subr.bf16.mxu0 0
    %248 = vmatpush1.bf16.msra.mxu0 0
    %249 = vmatprep.subr.bf16.mxu0 0
    %250 = vmatpush1.bf16.msra.mxu0 0
    %251 = vmatprep.subr.bf16.mxu0 0
    %252 = vmatpush1.bf16.msra.mxu0 0
    %253 = vmatprep.subr.bf16.mxu0 0
    %254 = vmatpush1.bf16.msra.mxu0 0
    %255 = vmatprep.subr.bf16.mxu0 0
    %256 = vmatpush1.bf16.msra.mxu0 0
    %257 = vmatprep.subr.bf16.mxu0 0
    %258 = vmatpush1.bf16.msra.mxu0 0
    %259 = vmatprep.subr.bf16.mxu0 0
    %260 = vmatpush1.bf16.msra.mxu0 0
    %261 = vmatprep.subr.bf16.mxu0 0
    %262 = vmatpush1.bf16.msra.mxu0 0
    %263 = vmatprep.subr.bf16.mxu0 0
    %264 = vmatpush1.bf16.msra.mxu0 0
    %265 = vmatprep.mubr.bf16.mxu0 0
    %266 = vmatmul.mubr.bf16.gmra.mrb[0].mxu0 %v228
    %v267 = vpop.f32.mrb[0].mxu0
    %v268 = vadd.f32 %v212, %v267
    %v269 = vpop.f32.mrb[0].mxu0
    %v270 = vpop.f32.mrb[0].mxu0
    %v271 = vadd.f32 %v212, %v270
    %v272 = vpop.f32.mrb[0].mxu0
    %273 = vmatprep.mubr.bf16.mxu0 0
    %274 = vmatmul.mubr.bf16.gmra.mrb[0].mxu0 %v231
    %v275 = vpop.f32.mrb[0].mxu0
    %v276 = vadd.f32 %v212, %v275
    %v277 = vpop.f32.mrb[0].mxu0
    %v278 = vpop.f32.mrb[0].mxu0
    %v279 = vadd.f32 %v212, %v278
    %v280 = vpop.f32.mrb[0].mxu0
    %281 = vdwg.mxu0
    %v282 = vmul.f32 %v268, %v268
    %v283 = vmul.f32 %v271, %v271
    %v284 = vmul.f32 %v276, %v276
    %v285 = vmul.f32 %v279, %v279
    %v286 = vmul.f32 %v268, %v282
    %v287 = vmul.f32 %v271, %v283
    %v288 = vmul.f32 %v276, %v284
    %v289 = vmul.f32 %v279, %v285
    %v290 = vmul.f32 %v286, 0.044715
    %v291 = vmul.f32 %v287, 0.044715
    %v292 = vmul.f32 %v288, 0.044715
    %v293 = vmul.f32 %v289, 0.044715
    %v294 = vadd.f32 %v268, %v290
    %v295 = vadd.f32 %v271, %v291
    %v296 = vadd.f32 %v276, %v292
    %v297 = vadd.f32 %v279, %v293
    %v298 = vmul.f32 %v294, 0.7978846
    %v299 = vmul.f32 %v295, 0.7978846
    %v300 = vmul.f32 %v296, 0.7978846
    %v301 = vmul.f32 %v297, 0.7978846
    %v302 = vtanh.pop %v298
    %v303 = vtanh.pop %v299
    %v304 = vtanh.pop %v300
    %v305 = vtanh.pop %v301
    %v306 = vadd.f32 %v302, 1.0
    %v307 = vadd.f32 %v303, 1.0
    %v308 = vadd.f32 %v304, 1.0
    %v309 = vadd.f32 %v305, 1.0
    %v310 = vmul.f32 %v306, 0.5
    %v311 = vmul.f32 %v307, 0.5
    %v312 = vmul.f32 %v308, 0.5
    %v313 = vmul.f32 %v309, 0.5
    %v314 = vmul.f32 %v268, %v310
    %v315 = vmul.f32 %v271, %v311
    %v316 = vmul.f32 %v276, %v312
    %v317 = vmul.f32 %v279, %v313
    %v318 = vld [vmem:[#allocation3] sm:$0xff]
    %v319 = vld [vmem:[#allocation3 + $0x8] sm:$0xff]
    %v320 = vld [vmem:[#allocation3 + $0x10] sm:$0xff]
    %v321 = vld [vmem:[#allocation3 + $0x18] sm:$0xff]
    %v322 = vpack.c.bf16 %v315, %v314
    %v323 = vpack.c.bf16 %v317, %v316
    %v324 = vld [vmem:[%s7] sm:$0xf]
    %v325 = vld [vmem:[%s7 + $0x4] sm:$0xf]
    %v326 = vld [vmem:[%s7 + $0x8] sm:$0xf]
    %v327 = vld [vmem:[%s7 + $0xc] sm:$0xf]
    %v328 = vld [vmem:[%s7 + $0x10] sm:$0xf]
    %v329 = vld [vmem:[%s7 + $0x14] sm:$0xf]
    %v330 = vld [vmem:[%s7 + $0x18] sm:$0xf]
    %v331 = vld [vmem:[%s7 + $0x1c] sm:$0xf]
    %v332 = vld [vmem:[%s7 + $0x20] sm:$0xf]
    %v333 = vld [vmem:[%s7 + $0x24] sm:$0xf]
    %v334 = vld [vmem:[%s7 + $0x28] sm:$0xf]
    %v335 = vld [vmem:[%s7 + $0x2c] sm:$0xf]
    %v336 = vld [vmem:[%s7 + $0x30] sm:$0xf]
    %v337 = vld [vmem:[%s7 + $0x34] sm:$0xf]
    %v338 = vld [vmem:[%s7 + $0x38] sm:$0xf]
    %v339 = vld [vmem:[%s7 + $0x3c] sm:$0xf]
    %v356 = vunpack.c.l.b16 %v324
    %v357 = vunpack.c.l.b16 %v325
    %v358 = vunpack.c.l.b16 %v326
    %v359 = vunpack.c.l.b16 %v327
    %v360 = vunpack.c.l.b16 %v328
    %v361 = vunpack.c.l.b16 %v329
    %v362 = vunpack.c.l.b16 %v330
    %v363 = vunpack.c.l.b16 %v331
    %v364 = vunpack.c.l.b16 %v332
    %v365 = vunpack.c.l.b16 %v333
    %v366 = vunpack.c.l.b16 %v334
    %v367 = vunpack.c.l.b16 %v335
    %v368 = vunpack.c.l.b16 %v336
    %v369 = vunpack.c.l.b16 %v337
    %v370 = vunpack.c.l.b16 %v338
    %v371 = vunpack.c.l.b16 %v339
    %v372 = vpack.c.b16 %v357, %v356
    %v373 = vpack.c.b16 %v359, %v358
    %v374 = vpack.c.b16 %v361, %v360
    %v375 = vpack.c.b16 %v363, %v362
    %v376 = vpack.c.b16 %v365, %v364
    %v377 = vpack.c.b16 %v367, %v366
    %v378 = vpack.c.b16 %v369, %v368
    %v379 = vpack.c.b16 %v371, %v370
    %388 = vmatprep.subr.bf16.mxu0 0
    %389 = vmatpush1.bf16.msra.mxu0 %v372
    %390 = vmatprep.subr.bf16.mxu0 0
    %391 = vmatpush1.bf16.msra.mxu0 %v373
    %392 = vmatprep.subr.bf16.mxu0 0
    %393 = vmatpush1.bf16.msra.mxu0 %v374
    %394 = vmatprep.subr.bf16.mxu0 0
    %395 = vmatpush1.bf16.msra.mxu0 %v375
    %396 = vmatprep.subr.bf16.mxu0 0
    %397 = vmatpush1.bf16.msra.mxu0 %v376
    %398 = vmatprep.subr.bf16.mxu0 0
    %399 = vmatpush1.bf16.msra.mxu0 %v377
    %400 = vmatprep.subr.bf16.mxu0 0
    %401 = vmatpush1.bf16.msra.mxu0 %v378
    %402 = vmatprep.subr.bf16.mxu0 0
    %403 = vmatpush1.bf16.msra.mxu0 %v379
    %404 = vmatprep.subr.bf16.mxu0 0
    %405 = vmatpush1.bf16.msra.mxu0 0
    %406 = vmatprep.subr.bf16.mxu0 0
    %407 = vmatpush1.bf16.msra.mxu0 0
    %408 = vmatprep.subr.bf16.mxu0 0
    %409 = vmatpush1.bf16.msra.mxu0 0
    %410 = vmatprep.subr.bf16.mxu0 0
    %411 = vmatpush1.bf16.msra.mxu0 0
    %412 = vmatprep.subr.bf16.mxu0 0
    %413 = vmatpush1.bf16.msra.mxu0 0
    %414 = vmatprep.subr.bf16.mxu0 0
    %415 = vmatpush1.bf16.msra.mxu0 0
    %416 = vmatprep.subr.bf16.mxu0 0
    %417 = vmatpush1.bf16.msra.mxu0 0
    %418 = vmatprep.subr.bf16.mxu0 0
    %419 = vmatpush1.bf16.msra.mxu0 0
    %420 = vmatprep.mubr.bf16.mxu0 0
    %421 = vmatmul.mubr.bf16.gmra.mrb[0].mxu0 %v322
    %v422 = vpop.f32.mrb[0].mxu0
    %v423 = vadd.f32 0.0, %v422
    %v424 = vpop.f32.mrb[0].mxu0
    %v425 = vpop.f32.mrb[0].mxu0
    %v426 = vadd.f32 0.0, %v425
    %v427 = vpop.f32.mrb[0].mxu0
    %428 = vmatprep.mubr.bf16.mxu0 0
    %429 = vmatmul.mubr.bf16.gmra.mrb[0].mxu0 %v323
    %v430 = vpop.f32.mrb[0].mxu0
    %v431 = vadd.f32 0.0, %v430
    %v432 = vpop.f32.mrb[0].mxu0
    %v433 = vpop.f32.mrb[0].mxu0
    %v434 = vadd.f32 0.0, %v433
    %v435 = vpop.f32.mrb[0].mxu0
    %436 = vdwg.mxu0
    %v437 = vadd.f32 %v318, %v423
    %v438 = vadd.f32 %v319, %v426
    %v439 = vadd.f32 %v320, %v431
    %v440 = vadd.f32 %v321, %v434
    %441 = vst.msk [vmem:[#allocation3] sm:$0xff] %vm226, %v437
    %442 = vst.msk [vmem:[#allocation3 + $0x8] sm:$0xff] %vm226, %v438
    %443 = vst.msk [vmem:[#allocation3 + $0x10] sm:$0xff] %vm226, %v439
    %444 = vst.msk [vmem:[#allocation3 + $0x18] sm:$0xff] %vm226, %v440
    // Predicated region
    $region42: #{tpu_custom_call.1} parent=1 // pred_check
      %p445 = pneg %p34
    $region43: #{tpu_custom_call.1} parent=1 // pred_check_branch
      %447 = sbr.rel (%p445) target = $region45
    $region44: #{tpu_custom_call.1} parent=1 // pred_region
      %v448 = vld [vmem:[%s0] sm:$0xff]
      %v449 = vld [vmem:[%s0 + $0x8] sm:$0xff]
      %v450 = vld [vmem:[%s0 + $0x10] sm:$0xff]
      %v451 = vld [vmem:[%s0 + $0x18] sm:$0xff]
      %v452 = vld [vmem:[#allocation3] sm:$0xff]
      %v453 = vld [vmem:[#allocation3 + $0x8] sm:$0xff]
      %v454 = vld [vmem:[#allocation3 + $0x10] sm:$0xff]
      %v455 = vld [vmem:[#allocation3 + $0x18] sm:$0xff]
      %v456 = vadd.f32 %v448, %v452
      %v457 = vadd.f32 %v449, %v453
      %v458 = vadd.f32 %v450, %v454
      %v459 = vadd.f32 %v451, %v455
      %v460 = vld [vmem:[%s8] sm:$0x1]
      %v462 = vlaneseq
      %v463 = vshrl.u32 %v462, 7
      %v464 = vsub.s32 0, %v463
      %v465 = vrot.slane %v460, %v464
      %v467 = vadd.f32 %v456, %v465
      %v468 = vadd.f32 %v457, %v465
      %v469 = vadd.f32 %v458, %v465
      %v470 = vadd.f32 %v459, %v465
      %471 = vst.msk [vmem:[#allocation4] sm:$0xff] %vm226, %v467
      %472 = vst.msk [vmem:[#allocation4 + $0x8] sm:$0xff] %vm226, %v468
      %473 = vst.msk [vmem:[#allocation4 + $0x10] sm:$0xff] %vm226, %v469
      %474 = vst.msk [vmem:[#allocation4 + $0x18] sm:$0xff] %vm226, %v470
    $region45: #{tpu_custom_call.1} parent=1 // pred_fallthru
      _
    // Predicated region
    $region46: #{tpu_custom_call.1} parent=1 // pred_check
      _
    $region47: #{tpu_custom_call.1} parent=1 // pred_check_branch
      %476 = sbr.rel (0) target = $region49
    $region48: #{tpu_custom_call.1} parent=1 // pred_region
      %s478 = ssub.s32 512, 512
      %479 = vsyncadd [#allocation5], %s478
      %s480 = sshll.u32 [#allocation4], 4
      %s481 = int_to_ptr.vmem [resolvable:$true] %s480
      %486 = dma.vmem_to_hbm [thread:$0]  %s481, 512, %s9, [#allocation5], 128, 128, 8
    $region49: #{tpu_custom_call.1} parent=1 // pred_fallthru
      _
    // Predicated region
    $region50: #{tpu_custom_call.1} parent=1 // pred_check
      _
    $region51: #{tpu_custom_call.1} parent=1 // pred_check_branch
      %488 = sbr.rel (0) target = $region53
    $region52: #{tpu_custom_call.1} parent=1 // pred_region
      %489 = dma.done [#allocation5], 512
    $region53: #{tpu_custom_call.1} parent=1 // pred_fallthru
      _
    %490 = vsyncpa [#allocation5], 1

</llo_original>
